<compile_context>
chip_gen: v7x
topology: tpu7x:2x2x1
jax: 0.10.0
libtpu: 0.0.40
codegen_flags: <defaults>
</compile_context>

<pallas_src>
import jax
import jax.numpy as jnp
from jax.experimental import pallas as pl
from jax.experimental.pallas import tpu as pltpu


_VMEM_LIMIT_BYTES = 48 * 1024 * 1024   # explicit scoped VMEM limit (v7x-safe)
_VMEM_DATA_BUDGET = 36 * 1024 * 1024   # per-step double-buffered data budget


def _second_minor_pad(n, itemsize):
    """Sublane padding of the second-minor dim (8 for f32, 16 for bf16, ...)."""
    mult = max(8, 32 // itemsize)
    return ((n + mult - 1) // mult) * mult


def _largest_divisor_tile(total, unit, target):
    """Largest multiple of `unit` dividing `total` that is <= target.
    Full extent (always legal) if total already fits under target."""
    if total <= target:
        return total
    best = None
    cand = unit
    while cand <= target:
        if total % cand == 0:
            best = cand
        cand += unit
    return best if best is not None else total


def _make_vpu_kernel(c_out, c_in):
    """Small-C channel mix on the VPU: scalar-broadcast FMAs, weight in SMEM.

    x_ref: (1, c_in, s, 128)   o_ref: (1, c_out, s, 128)
    Each channel plane is a dense (s, 128) tile -> unmasked loads/stores, no
    whole-slab materialization (per-channel loads inside the loop).
    """

    def kernel(w_ref, x_ref, o_ref):
        for o in range(c_out):
            acc = w_ref[o, 0] * x_ref[0, 0]
            for c in range(1, c_in):
                acc = acc + w_ref[o, c] * x_ref[0, c]
            o_ref[0, o] = acc.astype(o_ref.dtype)

    return kernel


def _mxu_kernel(w_ref, x_ref, o_ref):
    """Channel contraction on the MXU in the activation dtype, f32 accumulate."""
    out = jax.lax.dot_general(
        w_ref[...],            # (C_out, C_in), same dtype as the activations
        x_ref[0],              # (C_in, thw), lane-dense, fed natively (no upcast)
        dimension_numbers=(((1,), (0,)), ((), ())),
        preferred_element_type=jnp.float32,
    )
    o_ref[0] = out.astype(o_ref.dtype)


def invconv2d_forward(x_nchw, weight_cc, *, lane_tile_target=32768):
    """Forward of InvConv2d: F.conv2d(x, W[:, :, None, None]).

    x_nchw:    (N, C, H, W)
    weight_cc: (C_out, C_in) squeezed 1x1-conv weight.
    Returns    (N, C_out, H, W).
    """
    N, C, H, W = x_nchw.shape
    C_out, C_in = weight_cc.shape
    assert C_in == C, "weight in_channels must match input channels"

    dtype = x_nchw.dtype
    itemsize = jnp.dtype(dtype).itemsize
    HW = H * W
    HW_pad = -(-HW // 128) * 128                      # lane-align flat spatial dim

    x_flat = x_nchw.reshape(N, C, HW)                 # metadata-only reshape
    if HW_pad != HW:
        x_flat = jnp.pad(x_flat, ((0, 0), (0, 0), (0, HW_pad - HW)))

    compiler_params = pltpu.CompilerParams(
        dimension_semantics=("parallel", "parallel"),
        vmem_limit_bytes=_VMEM_LIMIT_BYTES,
    )

    # VPU only for tiny channel counts in f32; bf16 / larger C goes to the MXU.
    use_vpu = (C <= 8) and (C_out <= 8) and (dtype == jnp.float32)

    if use_vpu:
        # ---- VPU path: per-channel dense (s, 128) planes --------------------
        S = HW_pad // 128
        per_row_bytes = 2 * (C + C_out) * 128 * itemsize    # dbl-buffered in+out
        s_cap = max(8, _VMEM_DATA_BUDGET // per_row_bytes)
        s_steps = max(8, (N * S) // 8)                      # keep >=8 grid steps
        s_target = max(8, min(512, s_cap, s_steps))

        if S > s_target and S % 8 != 0:
            # Pad spatial rows so a sublane-aligned (multiple-of-8) tile divides S.
            S_new = -(-S // 8) * 8
            x_flat = jnp.pad(x_flat, ((0, 0), (0, 0), (0, S_new * 128 - HW_pad)))
            HW_pad, S = S_new * 128, S_new
        s_tile = _largest_divisor_tile(S, 8, s_target)

        x4 = x_flat.reshape(N, C, S, 128)                   # metadata-only
        w = weight_cc.astype(jnp.float32)

        out4 = pl.pallas_call(
            _make_vpu_kernel(C_out, C_in),
            out_shape=jax.ShapeDtypeStruct((N, C_out, S, 128), dtype),
            grid=(N, S // s_tile),
            in_specs=[
                pl.BlockSpec(memory_space=pltpu.MemorySpace.SMEM),   # weight scalars
                pl.BlockSpec((1, C, s_tile, 128), lambda n, j: (n, 0, j, 0)),
            ],
            out_specs=pl.BlockSpec((1, C_out, s_tile, 128),
                                   lambda n, j: (n, 0, j, 0)),
            compiler_params=compiler_params,
        )(w, x4)
        out_flat = out4.reshape(N, C_out, HW_pad)
    else:
        # ---- MXU path: single dot_general in the activation dtype -----------
        w = weight_cc.astype(dtype)                         # e.g. bf16: native MXU rate
        c_pad = _second_minor_pad(C, itemsize)
        co_pad = _second_minor_pad(C_out, itemsize)
        # Double-buffered in+out slabs (incl. sublane channel padding) plus the
        # f32 dot result held before the downcast store.
        per_lane_bytes = 2 * (c_pad + co_pad) * itemsize + C_out * 4
        lane_cap = max(128, ((_VMEM_DATA_BUDGET // per_lane_bytes) // 128) * 128)
        steps_cap = max(128, ((N * HW_pad) // 8 // 128) * 128)   # keep >=8 grid steps
        lane_target = max(128, min(lane_tile_target, lane_cap, steps_cap))
        thw = _largest_divisor_tile(HW_pad, 128, lane_target)

        out_flat = pl.pallas_call(
            _mxu_kernel,
            out_shape=jax.ShapeDtypeStruct((N, C_out, HW_pad), dtype),
            grid=(N, HW_pad // thw),
            in_specs=[
                pl.BlockSpec((C_out, C_in), lambda n, j: (0, 0)),   # resident weight
                pl.BlockSpec((1, C, thw), lambda n, j: (n, 0, j)),  # pixel slab
            ],
            out_specs=pl.BlockSpec((1, C_out, thw), lambda n, j: (n, 0, j)),
            compiler_params=compiler_params,
        )(w, x_flat)

    return out_flat[:, :, :HW].reshape(N, C_out, H, W)


def make_invconv_weight(in_channel, key):
    # Mirrors torch: weight = randn(C, C); q, _ = qr(weight); param = q
    w = jax.random.normal(key, (in_channel, in_channel), dtype=jnp.float32)
    q, _ = jnp.linalg.qr(w)
    return q  # (C_out, C_in); the unsqueeze(2/3) is just the 1x1-conv view


if __name__ == "__main__":
    key = jax.random.PRNGKey(0)
    k_w, k_x, k_w2, k_x2 = jax.random.split(key, 4)

    # Small-C f32 case (the module's typical config): exercises the VPU path.
    N, C, H, W = 2, 4, 16, 16
    weight = make_invconv_weight(C, k_w)                           # (4, 4)
    x = jax.random.normal(k_x, (N, C, H, W), dtype=jnp.float32)    # NCHW

    out = jax.block_until_ready(invconv2d_forward(x, weight))
    ref = jnp.einsum("nchw,oc->nohw", x, weight)                   # F.conv2d 1x1 == channel mix
    assert out.shape == (N, C, H, W)
    assert jnp.allclose(out, ref, atol=1e-5, rtol=1e-5)

    # Larger-C bf16 case: exercises the MXU path (bf16 fed natively, f32 acc).
    C2 = 32
    weight2 = make_invconv_weight(C2, k_w2)                        # (32, 32)
    x2 = jax.random.normal(k_x2, (N, C2, H, W), dtype=jnp.float32).astype(jnp.bfloat16)

    out2 = jax.block_until_ready(invconv2d_forward(x2, weight2))
    ref2 = jnp.einsum(
        "nchw,oc->nohw",
        x2.astype(jnp.float32),
        weight2.astype(jnp.bfloat16).astype(jnp.float32),
    )
    assert out2.shape == (N, C2, H, W)
    assert jnp.allclose(out2.astype(jnp.float32), ref2, atol=6e-2, rtol=6e-2)

    print("KERNEL_OK")
</pallas_src>

<mosaic_0001>
module attributes {stable_mosaic.version = 11 : i64} {
  func.func @kernel(%arg0: i32, %arg1: i32, %arg2: memref<4x4xf32, #tpu.memory_space<smem>>, %arg3: memref<1x4x2x128xf32, #tpu.memory_space<vmem>>, %arg4: memref<1x4x2x128xf32, #tpu.memory_space<vmem>>) attributes {dimension_semantics = [#tpu.dimension_semantics<parallel>, #tpu.dimension_semantics<parallel>], iteration_bounds = array<i64: 2, 1>, scalar_prefetch = 0 : i64, scratch_operands = 0 : i64, tpu.core_type = #tpu.core_type<tc>, window_params = [{transform_indices = @transform_0, window_bounds = array<i64: 4, 4>}, {transform_indices = @transform_1, window_bounds = array<i64: 1, 4, 2, 128>}, {transform_indices = @transform_2, window_bounds = array<i64: 1, 4, 2, 128>}]} {
    %c0 = arith.constant 0 : index
    %c0_0 = arith.constant 0 : index
    %0 = memref.load %arg2[%c0, %c0_0] : memref<4x4xf32, #tpu.memory_space<smem>>
    %c0_1 = arith.constant 0 : index
    %c0_2 = arith.constant 0 : index
    %c0_3 = arith.constant 0 : index
    %c0_4 = arith.constant 0 : index
    %1 = vector.load %arg3[%c0_1, %c0_2, %c0_3, %c0_4] : memref<1x4x2x128xf32, #tpu.memory_space<vmem>>, vector<1x1x2x128xf32>
    %2 = vector.shape_cast %1 : vector<1x1x2x128xf32> to vector<2x128xf32>
    %3 = vector.broadcast %0 : f32 to vector<2x128xf32>
    %4 = arith.mulf %3, %2 : vector<2x128xf32>
    %c0_5 = arith.constant 0 : index
    %c1 = arith.constant 1 : index
    %5 = memref.load %arg2[%c0_5, %c1] : memref<4x4xf32, #tpu.memory_space<smem>>
    %c0_6 = arith.constant 0 : index
    %c1_7 = arith.constant 1 : index
    %c0_8 = arith.constant 0 : index
    %c0_9 = arith.constant 0 : index
    %6 = vector.load %arg3[%c0_6, %c1_7, %c0_8, %c0_9] : memref<1x4x2x128xf32, #tpu.memory_space<vmem>>, vector<1x1x2x128xf32>
    %7 = vector.shape_cast %6 : vector<1x1x2x128xf32> to vector<2x128xf32>
    %8 = vector.broadcast %5 : f32 to vector<2x128xf32>
    %9 = arith.mulf %8, %7 : vector<2x128xf32>
    %10 = arith.addf %4, %9 : vector<2x128xf32>
    %c0_10 = arith.constant 0 : index
    %c2 = arith.constant 2 : index
    %11 = memref.load %arg2[%c0_10, %c2] : memref<4x4xf32, #tpu.memory_space<smem>>
    %c0_11 = arith.constant 0 : index
    %c2_12 = arith.constant 2 : index
    %c0_13 = arith.constant 0 : index
    %c0_14 = arith.constant 0 : index
    %12 = vector.load %arg3[%c0_11, %c2_12, %c0_13, %c0_14] : memref<1x4x2x128xf32, #tpu.memory_space<vmem>>, vector<1x1x2x128xf32>
    %13 = vector.shape_cast %12 : vector<1x1x2x128xf32> to vector<2x128xf32>
    %14 = vector.broadcast %11 : f32 to vector<2x128xf32>
    %15 = arith.mulf %14, %13 : vector<2x128xf32>
    %16 = arith.addf %10, %15 : vector<2x128xf32>
    %c0_15 = arith.constant 0 : index
    %c3 = arith.constant 3 : index
    %17 = memref.load %arg2[%c0_15, %c3] : memref<4x4xf32, #tpu.memory_space<smem>>
    %c0_16 = arith.constant 0 : index
    %c3_17 = arith.constant 3 : index
    %c0_18 = arith.constant 0 : index
    %c0_19 = arith.constant 0 : index
    %18 = vector.load %arg3[%c0_16, %c3_17, %c0_18, %c0_19] : memref<1x4x2x128xf32, #tpu.memory_space<vmem>>, vector<1x1x2x128xf32>
    %19 = vector.shape_cast %18 : vector<1x1x2x128xf32> to vector<2x128xf32>
    %20 = vector.broadcast %17 : f32 to vector<2x128xf32>
    %21 = arith.mulf %20, %19 : vector<2x128xf32>
    %22 = arith.addf %16, %21 : vector<2x128xf32>
    %c0_20 = arith.constant 0 : index
    %c0_21 = arith.constant 0 : index
    %c0_22 = arith.constant 0 : index
    %c0_23 = arith.constant 0 : index
    %23 = vector.load %arg4[%c0_20, %c0_21, %c0_22, %c0_23] : memref<1x4x2x128xf32, #tpu.memory_space<vmem>>, vector<1x1x2x128xf32>
    %24 = vector.shape_cast %23 : vector<1x1x2x128xf32> to vector<2x128xf32>
    %25 = vector.shape_cast %22 : vector<2x128xf32> to vector<1x1x2x128xf32>
    tpu.vector_store %arg4[%c0_20, %c0_21, %c0_22, %c0_23], %25 {strides = array<i32>} : memref<1x4x2x128xf32, #tpu.memory_space<vmem>>, vector<1x1x2x128xf32>,
    %c1_24 = arith.constant 1 : index
    %c0_25 = arith.constant 0 : index
    %26 = memref.load %arg2[%c1_24, %c0_25] : memref<4x4xf32, #tpu.memory_space<smem>>
    %c0_26 = arith.constant 0 : index
    %c0_27 = arith.constant 0 : index
    %c0_28 = arith.constant 0 : index
    %c0_29 = arith.constant 0 : index
    %27 = vector.load %arg3[%c0_26, %c0_27, %c0_28, %c0_29] : memref<1x4x2x128xf32, #tpu.memory_space<vmem>>, vector<1x1x2x128xf32>
    %28 = vector.shape_cast %27 : vector<1x1x2x128xf32> to vector<2x128xf32>
    %29 = vector.broadcast %26 : f32 to vector<2x128xf32>
    %30 = arith.mulf %29, %28 : vector<2x128xf32>
    %c1_30 = arith.constant 1 : index
    %c1_31 = arith.constant 1 : index
    %31 = memref.load %arg2[%c1_30, %c1_31] : memref<4x4xf32, #tpu.memory_space<smem>>
    %c0_32 = arith.constant 0 : index
    %c1_33 = arith.constant 1 : index
    %c0_34 = arith.constant 0 : index
    %c0_35 = arith.constant 0 : index
    %32 = vector.load %arg3[%c0_32, %c1_33, %c0_34, %c0_35] : memref<1x4x2x128xf32, #tpu.memory_space<vmem>>, vector<1x1x2x128xf32>
    %33 = vector.shape_cast %32 : vector<1x1x2x128xf32> to vector<2x128xf32>
    %34 = vector.broadcast %31 : f32 to vector<2x128xf32>
    %35 = arith.mulf %34, %33 : vector<2x128xf32>
    %36 = arith.addf %30, %35 : vector<2x128xf32>
    %c1_36 = arith.constant 1 : index
    %c2_37 = arith.constant 2 : index
    %37 = memref.load %arg2[%c1_36, %c2_37] : memref<4x4xf32, #tpu.memory_space<smem>>
    %c0_38 = arith.constant 0 : index
    %c2_39 = arith.constant 2 : index
    %c0_40 = arith.constant 0 : index
    %c0_41 = arith.constant 0 : index
    %38 = vector.load %arg3[%c0_38, %c2_39, %c0_40, %c0_41] : memref<1x4x2x128xf32, #tpu.memory_space<vmem>>, vector<1x1x2x128xf32>
    %39 = vector.shape_cast %38 : vector<1x1x2x128xf32> to vector<2x128xf32>
    %40 = vector.broadcast %37 : f32 to vector<2x128xf32>
    %41 = arith.mulf %40, %39 : vector<2x128xf32>
    %42 = arith.addf %36, %41 : vector<2x128xf32>
    %c1_42 = arith.constant 1 : index
    %c3_43 = arith.constant 3 : index
    %43 = memref.load %arg2[%c1_42, %c3_43] : memref<4x4xf32, #tpu.memory_space<smem>>
    %c0_44 = arith.constant 0 : index
    %c3_45 = arith.constant 3 : index
    %c0_46 = arith.constant 0 : index
    %c0_47 = arith.constant 0 : index
    %44 = vector.load %arg3[%c0_44, %c3_45, %c0_46, %c0_47] : memref<1x4x2x128xf32, #tpu.memory_space<vmem>>, vector<1x1x2x128xf32>
    %45 = vector.shape_cast %44 : vector<1x1x2x128xf32> to vector<2x128xf32>
    %46 = vector.broadcast %43 : f32 to vector<2x128xf32>
    %47 = arith.mulf %46, %45 : vector<2x128xf32>
    %48 = arith.addf %42, %47 : vector<2x128xf32>
    %c0_48 = arith.constant 0 : index
    %c1_49 = arith.constant 1 : index
    %c0_50 = arith.constant 0 : index
    %c0_51 = arith.constant 0 : index
    %49 = vector.load %arg4[%c0_48, %c1_49, %c0_50, %c0_51] : memref<1x4x2x128xf32, #tpu.memory_space<vmem>>, vector<1x1x2x128xf32>
    %50 = vector.shape_cast %49 : vector<1x1x2x128xf32> to vector<2x128xf32>
    %51 = vector.shape_cast %48 : vector<2x128xf32> to vector<1x1x2x128xf32>
    tpu.vector_store %arg4[%c0_48, %c1_49, %c0_50, %c0_51], %51 {strides = array<i32>} : memref<1x4x2x128xf32, #tpu.memory_space<vmem>>, vector<1x1x2x128xf32>,
    %c2_52 = arith.constant 2 : index
    %c0_53 = arith.constant 0 : index
    %52 = memref.load %arg2[%c2_52, %c0_53] : memref<4x4xf32, #tpu.memory_space<smem>>
    %c0_54 = arith.constant 0 : index
    %c0_55 = arith.constant 0 : index
    %c0_56 = arith.constant 0 : index
    %c0_57 = arith.constant 0 : index
    %53 = vector.load %arg3[%c0_54, %c0_55, %c0_56, %c0_57] : memref<1x4x2x128xf32, #tpu.memory_space<vmem>>, vector<1x1x2x128xf32>
    %54 = vector.shape_cast %53 : vector<1x1x2x128xf32> to vector<2x128xf32>
    %55 = vector.broadcast %52 : f32 to vector<2x128xf32>
    %56 = arith.mulf %55, %54 : vector<2x128xf32>
    %c2_58 = arith.constant 2 : index
    %c1_59 = arith.constant 1 : index
    %57 = memref.load %arg2[%c2_58, %c1_59] : memref<4x4xf32, #tpu.memory_space<smem>>
    %c0_60 = arith.constant 0 : index
    %c1_61 = arith.constant 1 : index
    %c0_62 = arith.constant 0 : index
    %c0_63 = arith.constant 0 : index
    %58 = vector.load %arg3[%c0_60, %c1_61, %c0_62, %c0_63] : memref<1x4x2x128xf32, #tpu.memory_space<vmem>>, vector<1x1x2x128xf32>
    %59 = vector.shape_cast %58 : vector<1x1x2x128xf32> to vector<2x128xf32>
    %60 = vector.broadcast %57 : f32 to vector<2x128xf32>
    %61 = arith.mulf %60, %59 : vector<2x128xf32>
    %62 = arith.addf %56, %61 : vector<2x128xf32>
    %c2_64 = arith.constant 2 : index
    %c2_65 = arith.constant 2 : index
    %63 = memref.load %arg2[%c2_64, %c2_65] : memref<4x4xf32, #tpu.memory_space<smem>>
    %c0_66 = arith.constant 0 : index
    %c2_67 = arith.constant 2 : index
    %c0_68 = arith.constant 0 : index
    %c0_69 = arith.constant 0 : index
    %64 = vector.load %arg3[%c0_66, %c2_67, %c0_68, %c0_69] : memref<1x4x2x128xf32, #tpu.memory_space<vmem>>, vector<1x1x2x128xf32>
    %65 = vector.shape_cast %64 : vector<1x1x2x128xf32> to vector<2x128xf32>
    %66 = vector.broadcast %63 : f32 to vector<2x128xf32>
    %67 = arith.mulf %66, %65 : vector<2x128xf32>
    %68 = arith.addf %62, %67 : vector<2x128xf32>
    %c2_70 = arith.constant 2 : index
    %c3_71 = arith.constant 3 : index
    %69 = memref.load %arg2[%c2_70, %c3_71] : memref<4x4xf32, #tpu.memory_space<smem>>
    %c0_72 = arith.constant 0 : index
    %c3_73 = arith.constant 3 : index
    %c0_74 = arith.constant 0 : index
    %c0_75 = arith.constant 0 : index
    %70 = vector.load %arg3[%c0_72, %c3_73, %c0_74, %c0_75] : memref<1x4x2x128xf32, #tpu.memory_space<vmem>>, vector<1x1x2x128xf32>
    %71 = vector.shape_cast %70 : vector<1x1x2x128xf32> to vector<2x128xf32>
    %72 = vector.broadcast %69 : f32 to vector<2x128xf32>
    %73 = arith.mulf %72, %71 : vector<2x128xf32>
    %74 = arith.addf %68, %73 : vector<2x128xf32>
    %c0_76 = arith.constant 0 : index
    %c2_77 = arith.constant 2 : index
    %c0_78 = arith.constant 0 : index
    %c0_79 = arith.constant 0 : index
    %75 = vector.load %arg4[%c0_76, %c2_77, %c0_78, %c0_79] : memref<1x4x2x128xf32, #tpu.memory_space<vmem>>, vector<1x1x2x128xf32>
    %76 = vector.shape_cast %75 : vector<1x1x2x128xf32> to vector<2x128xf32>
    %77 = vector.shape_cast %74 : vector<2x128xf32> to vector<1x1x2x128xf32>
    tpu.vector_store %arg4[%c0_76, %c2_77, %c0_78, %c0_79], %77 {strides = array<i32>} : memref<1x4x2x128xf32, #tpu.memory_space<vmem>>, vector<1x1x2x128xf32>,
    %c3_80 = arith.constant 3 : index
    %c0_81 = arith.constant 0 : index
    %78 = memref.load %arg2[%c3_80, %c0_81] : memref<4x4xf32, #tpu.memory_space<smem>>
    %c0_82 = arith.constant 0 : index
    %c0_83 = arith.constant 0 : index
    %c0_84 = arith.constant 0 : index
    %c0_85 = arith.constant 0 : index
    %79 = vector.load %arg3[%c0_82, %c0_83, %c0_84, %c0_85] : memref<1x4x2x128xf32, #tpu.memory_space<vmem>>, vector<1x1x2x128xf32>
    %80 = vector.shape_cast %79 : vector<1x1x2x128xf32> to vector<2x128xf32>
    %81 = vector.broadcast %78 : f32 to vector<2x128xf32>
    %82 = arith.mulf %81, %80 : vector<2x128xf32>
    %c3_86 = arith.constant 3 : index
    %c1_87 = arith.constant 1 : index
    %83 = memref.load %arg2[%c3_86, %c1_87] : memref<4x4xf32, #tpu.memory_space<smem>>
    %c0_88 = arith.constant 0 : index
    %c1_89 = arith.constant 1 : index
    %c0_90 = arith.constant 0 : index
    %c0_91 = arith.constant 0 : index
    %84 = vector.load %arg3[%c0_88, %c1_89, %c0_90, %c0_91] : memref<1x4x2x128xf32, #tpu.memory_space<vmem>>, vector<1x1x2x128xf32>
    %85 = vector.shape_cast %84 : vector<1x1x2x128xf32> to vector<2x128xf32>
    %86 = vector.broadcast %83 : f32 to vector<2x128xf32>
    %87 = arith.mulf %86, %85 : vector<2x128xf32>
    %88 = arith.addf %82, %87 : vector<2x128xf32>
    %c3_92 = arith.constant 3 : index
    %c2_93 = arith.constant 2 : index
    %89 = memref.load %arg2[%c3_92, %c2_93] : memref<4x4xf32, #tpu.memory_space<smem>>
    %c0_94 = arith.constant 0 : index
    %c2_95 = arith.constant 2 : index
    %c0_96 = arith.constant 0 : index
    %c0_97 = arith.constant 0 : index
    %90 = vector.load %arg3[%c0_94, %c2_95, %c0_96, %c0_97] : memref<1x4x2x128xf32, #tpu.memory_space<vmem>>, vector<1x1x2x128xf32>
    %91 = vector.shape_cast %90 : vector<1x1x2x128xf32> to vector<2x128xf32>
    %92 = vector.broadcast %89 : f32 to vector<2x128xf32>
    %93 = arith.mulf %92, %91 : vector<2x128xf32>
    %94 = arith.addf %88, %93 : vector<2x128xf32>
    %c3_98 = arith.constant 3 : index
    %c3_99 = arith.constant 3 : index
    %95 = memref.load %arg2[%c3_98, %c3_99] : memref<4x4xf32, #tpu.memory_space<smem>>
    %c0_100 = arith.constant 0 : index
    %c3_101 = arith.constant 3 : index
    %c0_102 = arith.constant 0 : index
    %c0_103 = arith.constant 0 : index
    %96 = vector.load %arg3[%c0_100, %c3_101, %c0_102, %c0_103] : memref<1x4x2x128xf32, #tpu.memory_space<vmem>>, vector<1x1x2x128xf32>
    %97 = vector.shape_cast %96 : vector<1x1x2x128xf32> to vector<2x128xf32>
    %98 = vector.broadcast %95 : f32 to vector<2x128xf32>
    %99 = arith.mulf %98, %97 : vector<2x128xf32>
    %100 = arith.addf %94, %99 : vector<2x128xf32>
    %c0_104 = arith.constant 0 : index
    %c3_105 = arith.constant 3 : index
    %c0_106 = arith.constant 0 : index
    %c0_107 = arith.constant 0 : index
    %101 = vector.load %arg4[%c0_104, %c3_105, %c0_106, %c0_107] : memref<1x4x2x128xf32, #tpu.memory_space<vmem>>, vector<1x1x2x128xf32>
    %102 = vector.shape_cast %101 : vector<1x1x2x128xf32> to vector<2x128xf32>
    %103 = vector.shape_cast %100 : vector<2x128xf32> to vector<1x1x2x128xf32>
    tpu.vector_store %arg4[%c0_104, %c3_105, %c0_106, %c0_107], %103 {strides = array<i32>} : memref<1x4x2x128xf32, #tpu.memory_space<vmem>>, vector<1x1x2x128xf32>,
    return
  }
  func.func @transform_0(%arg0: i32, %arg1: i32) -> (i32, i32) {
    %c0_i32 = arith.constant 0 : i32
    %c0_i32_0 = arith.constant 0 : i32
    %c0_i32_1 = arith.constant 0 : i32
    return %c0_i32, %c0_i32_0 : i32, i32
  }
  func.func @transform_1(%arg0: i32, %arg1: i32) -> (i32, i32, i32, i32) {
    %c0_i32 = arith.constant 0 : i32
    %c0_i32_0 = arith.constant 0 : i32
    %c0_i32_1 = arith.constant 0 : i32
    return %arg0, %c0_i32, %arg1, %c0_i32_0 : i32, i32, i32, i32
  }
  func.func @transform_2(%arg0: i32, %arg1: i32) -> (i32, i32, i32, i32) {
    %c0_i32 = arith.constant 0 : i32
    %c0_i32_0 = arith.constant 0 : i32
    %c0_i32_1 = arith.constant 0 : i32
    return %arg0, %c0_i32, %arg1, %c0_i32_0 : i32, i32, i32, i32
  }
}

</mosaic_0001>

<llo_original>
// kernel: tpu_custom_call.1
$region0: #{tpu_custom_call.1}
  #allocation0 [shape = 'u32[]', space=smem, size = 0x4, offset = 0x4, fixed_abs, tag = 'smem constant byte address 0x4 - core index']
  #allocation1 [shape = 'u32[144,128]{1,0:T(1,128)}', space=vmem, size = 0x12000, scoped, tag = 'internal scratch']
  %s0 = inlined_call_operand.hbm [shape: f32[4,4], index: 0, kind: input, shape index: {}]
  %s1 = inlined_call_operand.hbm [shape: f32[2,4,2,128], index: 1, kind: input, shape index: {}]
  %s2 = inlined_call_operand.hbm [shape: f32[2,4,2,128], index: 2, kind: output, shape index: {}]
  %s3 = sld [smem:[#allocation0]]
  $region49: #{tpu_custom_call.1} parent=0
    _
  %s5 = ssub.s32 1, %s3
  %s6 = scalar_select 0, %s5, %s3
  $region1: #{tpu_custom_call.1} parent=0
    #allocation2 [shape = 'u8[2048]{0}', space=smem, size = 0x800, scoped, tag = 'input window, operand 0, single buffered']
    #allocation3 [shape = 's32[2]{0}', space=sflag, size = 0x8, scoped, tag = 'scoped memory for tpu_custom_call.1']
    #allocation4 [shape = 's32[2]{0}', space=sflag, size = 0x8, scoped, tag = 'scoped memory for tpu_custom_call.1']
    #allocation5 [shape = 's32[2]{0}', space=sflag, size = 0x8, scoped, tag = 'scoped memory for tpu_custom_call.1']
    #allocation6 [shape = 'u8[8192]{0}', space=vmem, size = 0x2000, scoped, tag = 'input window, operand 1']
    #allocation7 [shape = 'u8[8192]{0}', space=vmem, size = 0x2000, scoped, tag = 'output window, operand 0']
    %7 = vsyncpa [#allocation5], 0
    %8 = vsyncpa [#allocation3], 0
    %s9 = scalar_lea.sflag [#allocation3], 1
    %10 = vsyncpa %s9, 0
    %11 = vsyncpa [#allocation4], 0
    %s12 = scalar_lea.sflag [#allocation4], 1
    %13 = vsyncpa %s12, 0
    loop: start=0, step=1, limit=4
    $region2: #{tpu_custom_call.1} parent=1 // loop_pre_header
      _
    $region3: #{tpu_custom_call.1} parent=1 // loop_header
      %s15 = sphi 0, %s19
      %p16 = scmp.ge.s32.totalorder %s15, 4
      %s22 = sphi 0, %s34
      %s23 = sphi 0, %s30
      %s24 = sphi 0, %s22
      %s25 = sphi 0, %s23
      %s26 = sphi 0, %s24
      %s27 = sphi 0, %s25
      %s35 = sphi 0, %s35
      %s37 = sphi 0, %s35
      %s38 = sphi 0, %s37
      %s52 = sphi 0, %s38
      %s60 = sphi 0, %s62
      %s63 = sphi 0, %s60
      %s64 = sphi 0, %s63
      %s80 = sphi 0, %s64
      %s88 = sphi 0, %s90
      %s91 = sphi 0, %s88
      %s92 = sphi 0, %s91
      %s108 = sphi 0, %s92
    $region4: #{tpu_custom_call.1} parent=1 // loop_header_branch
      %18 = sbr.rel (%p16) target = $region8
    $region5: #{tpu_custom_call.1} parent=1 // loop_body
      %s20 = ssub.s32 %s15, 1
      %s21 = ssub.s32 %s15, 2
      %s28 = sadd.s32 1, %s23
      %p29 = scmp.ge.s32.totalorder %s28, 1
      %s30 = scalar_select %p29, 0, %s28
      %s31 = sadd.s32 1, %s22
      %s32 = scalar_select %p29, %s31, %s22
      %p33 = scmp.ge.s32.totalorder %s32, 2
      %s34 = scalar_select %p33, 0, %s32
      %s36 = sadd.s32 %s35, 1
      %p39 = scmp.eq.s32.totalorder %s15, 1
      %p40 = scmp.ne.s32.totalorder %s35, %s37
      %p41 = scmp.eq.s32.totalorder %s15, 0
      %p42 = por %p40, %p41
      %p43 = scmp.ne.s32.totalorder %s35, %s37
      %p44 = scmp.eq.s32.totalorder %s20, 1
      %p45 = por %p43, %p44
      %p46 = scmp.ne.s32.totalorder %s37, %s38
      %p47 = scmp.eq.s32.totalorder %s20, 0
      %p48 = por %p46, %p47
      %p49 = scmp.ne.s32.totalorder %s37, %s38
      %p50 = scmp.eq.s32.totalorder %s21, 1
      %p51 = por %p49, %p50
      %p53 = scmp.ne.s32.totalorder %s38, %s52
      %p54 = scmp.eq.s32.totalorder %s21, 0
      %p55 = por %p53, %p54
      %s56 = ssub.s32 %s22, %s34
      %s57 = ssub.s32 %s23, %s30
      %s58 = sor.u32 %s56, %s57
      %p59 = scmp.eq.s32.totalorder %s58, 0
      %s61 = sadd.s32 %s60, 1
      %s62 = scalar_select %p59, %s60, %s61
      %p65 = pneg %p59
      %p66 = scmp.eq.s32.totalorder %s15, 1
      %p67 = por %p65, %p66
      %p68 = scmp.ne.s32.totalorder %s60, %s63
      %p69 = scmp.eq.s32.totalorder %s15, 0
      %p70 = por %p68, %p69
      %p71 = scmp.ne.s32.totalorder %s60, %s63
      %p72 = scmp.eq.s32.totalorder %s20, 1
      %p73 = por %p71, %p72
      %p74 = scmp.ne.s32.totalorder %s63, %s64
      %p75 = scmp.eq.s32.totalorder %s20, 0
      %p76 = por %p74, %p75
      %p77 = scmp.ne.s32.totalorder %s63, %s64
      %p78 = scmp.eq.s32.totalorder %s21, 1
      %p79 = por %p77, %p78
      %p81 = scmp.ne.s32.totalorder %s64, %s80
      %p82 = scmp.eq.s32.totalorder %s21, 0
      %p83 = por %p81, %p82
      %s84 = ssub.s32 %s22, %s34
      %s85 = ssub.s32 %s23, %s30
      %s86 = sor.u32 %s84, %s85
      %p87 = scmp.eq.s32.totalorder %s86, 0
      %s89 = sadd.s32 %s88, 1
      %s90 = scalar_select %p87, %s88, %s89
      %p93 = pneg %p87
      %p94 = scmp.eq.s32.totalorder %s15, 1
      %p95 = por %p93, %p94
      %p96 = scmp.ne.s32.totalorder %s88, %s91
      %p97 = scmp.eq.s32.totalorder %s15, 0
      %p98 = por %p96, %p97
      %p99 = scmp.ne.s32.totalorder %s88, %s91
      %p100 = scmp.eq.s32.totalorder %s20, 1
      %p101 = por %p99, %p100
      %p102 = scmp.ne.s32.totalorder %s91, %s92
      %p103 = scmp.eq.s32.totalorder %s20, 0
      %p104 = por %p102, %p103
      %p105 = scmp.ne.s32.totalorder %s91, %s92
      %p106 = scmp.eq.s32.totalorder %s21, 1
      %p107 = por %p105, %p106
      %p109 = scmp.ne.s32.totalorder %s92, %s108
      %p110 = scmp.eq.s32.totalorder %s21, 0
      %p111 = por %p109, %p110
      %p112 = scmp.le.s32.totalorder 1, %s15
      %p113 = scmp.lt.s32.totalorder %s15, 3
      %p114 = pnand %p112, %p113
      %p115 = pneg %p114
      // Predicated region
      $region9: #{tpu_custom_call.1} parent=5 // pred_check
        _
      $region10: #{tpu_custom_call.1} parent=5 // pred_check_branch
        %117 = sbr.rel (%p114) target = $region12
      $region11: #{tpu_custom_call.1} parent=5 // pred_region
        %s118 = ssub.s32 %s15, 1
        // Predicated region
        $region13: #{tpu_custom_call.1} parent=11 // pred_check
          %p119 = pneg %p48
        $region14: #{tpu_custom_call.1} parent=11 // pred_check_branch
          %121 = sbr.rel (%p119) target = $region16
        $region15: #{tpu_custom_call.1} parent=11 // pred_region
          %s123 = ssub.s32 64, 64
          %124 = vsyncadd [#allocation5], %s123
          %127 = dma.hbm_to_smem %s0, 64, [#allocation2], [#allocation5]
        $region16: #{tpu_custom_call.1} parent=11 // pred_fallthru
          _
      $region12: #{tpu_custom_call.1} parent=5 // pred_fallthru
        _
      %p128 = scmp.lt.s32.totalorder %s15, 2
      // Predicated region
      $region17: #{tpu_custom_call.1} parent=5 // pred_check
        %p129 = pneg %p128
      $region18: #{tpu_custom_call.1} parent=5 // pred_check_branch
        %131 = sbr.rel (%p129) target = $region20
      $region19: #{tpu_custom_call.1} parent=5 // pred_region
        // Predicated region
        $region21: #{tpu_custom_call.1} parent=19 // pred_check
          %p132 = pneg %p70
        $region22: #{tpu_custom_call.1} parent=19 // pred_check_branch
          %134 = sbr.rel (%p132) target = $region24
        $region23: #{tpu_custom_call.1} parent=19 // pred_region
          %s135 = sand.u32 %s60, 1
          %s136 = scalar_lea.sflag [#allocation3], %s135
          %s137 = sand.u32 %s60, 1
          %s138 = smul.addr %s137, 8
          %s139 = scalar_lea.vmem [#allocation6], %s138
          %s141 = ssub.s32 128, 128
          %142 = vsyncadd %s136, %s141
          %s143 = smul.addr %s22, 4
          %s144 = sadd.s32 %s23, %s143
          %s145 = smul.addr %s144, 32
          %s146 = scalar_lea.hbm %s1, %s145
          %s147 = sshll.u32 %s139, 4
          %s148 = int_to_ptr.vmem [resolvable:$true] %s147
          %153 = dma.hbm_to_vmem [thread:$0]  %s146, 128, %s148, %s136, 32, 32, 2
        $region24: #{tpu_custom_call.1} parent=19 // pred_fallthru
          _
      $region20: #{tpu_custom_call.1} parent=5 // pred_fallthru
        _
      %p154 = scmp.le.s32.totalorder 1, %s15
      %p155 = scmp.lt.s32.totalorder %s15, 3
      %p156 = pnand %p154, %p155
      %p157 = pneg %p156
      // Predicated region
      $region25: #{tpu_custom_call.1} parent=5 // pred_check
        _
      $region26: #{tpu_custom_call.1} parent=5 // pred_check_branch
        %159 = sbr.rel (%p156) target = $region28
      $region27: #{tpu_custom_call.1} parent=5 // pred_region
        %s160 = ssub.s32 %s15, 1
        // Predicated region
        $region29: #{tpu_custom_call.1} parent=27 // pred_check
          %p161 = pneg %p48
        $region30: #{tpu_custom_call.1} parent=27 // pred_check_branch
          %163 = sbr.rel (%p161) target = $region32
        $region31: #{tpu_custom_call.1} parent=27 // pred_region
          %164 = dma.done [#allocation5], 64
        $region32: #{tpu_custom_call.1} parent=27 // pred_fallthru
          _
        %s165 = sand.u32 %s63, 1
        %s166 = scalar_lea.sflag [#allocation3], %s165
        %s167 = sand.u32 %s63, 1
        %s168 = smul.addr %s167, 8
        %s169 = scalar_lea.vmem [#allocation6], %s168
        // Predicated region
        $region33: #{tpu_custom_call.1} parent=27 // pred_check
          %p170 = pneg %p76
        $region34: #{tpu_custom_call.1} parent=27 // pred_check_branch
          %172 = sbr.rel (%p170) target = $region36
        $region35: #{tpu_custom_call.1} parent=27 // pred_region
          %173 = dma.done %s166, 128
        $region36: #{tpu_custom_call.1} parent=27 // pred_fallthru
          _
        %174 = sfence
        %p175 = pneg %p48
        %p176 = pneg %p45
        %s177 = sand.u32 %s63, 1
        %s178 = scalar_lea.sflag [#allocation3], %s177
        %s179 = sand.u32 %s63, 1
        %s180 = smul.addr %s179, 8
        %s181 = scalar_lea.vmem [#allocation6], %s180
        %p182 = pneg %p76
        %p183 = pneg %p73
        %p184 = pneg %p104
        %p185 = pneg %p101
        %s186 = sand.u32 %s91, 1
        %s187 = scalar_lea.sflag [#allocation4], %s186
        %s188 = sand.u32 %s91, 1
        %s189 = smul.addr %s188, 8
        %s190 = scalar_lea.vmem [#allocation7], %s189
        %s191 = sld [smem:[#allocation2]]
        %v192 = vld [vmem:[%s169] sm:$0x3]
        %v193 = vstv %s191
        %v194 = vmul.f32 %v193, %v192
        %s195 = sld [smem:[#allocation2 + $0x1]]
        %s196 = scalar_lea.vmem %s169, 2 [#allocation6]
        %v197 = vld [vmem:[%s196] sm:$0x3]
        %v198 = vstv %s195
        %v199 = vmul.f32 %v198, %v197
        %v200 = vadd.f32 %v194, %v199
        %s201 = sld [smem:[#allocation2 + $0x2]]
        %s202 = scalar_lea.vmem %s169, 4 [#allocation6]
        %v203 = vld [vmem:[%s202] sm:$0x3]
        %v204 = vstv %s201
        %v205 = vmul.f32 %v204, %v203
        %v206 = vadd.f32 %v200, %v205
        %s207 = sld [smem:[#allocation2 + $0x3]]
        %s208 = scalar_lea.vmem %s169, 6 [#allocation6]
        %v209 = vld [vmem:[%s208] sm:$0x3]
        %v210 = vstv %s207
        %v211 = vmul.f32 %v210, %v209
        %v212 = vadd.f32 %v206, %v211
        %213 = vst [vmem:[%s190] sm:$0x3] %v212
        %s214 = sld [smem:[#allocation2 + $0x80]]
        %v215 = vld [vmem:[%s169] sm:$0x3]
        %v216 = vstv %s214
        %v217 = vmul.f32 %v216, %v215
        %s218 = sld [smem:[#allocation2 + $0x81]]
        %v219 = vld [vmem:[%s196] sm:$0x3]
        %v220 = vstv %s218
        %v221 = vmul.f32 %v220, %v219
        %v222 = vadd.f32 %v217, %v221
        %s223 = sld [smem:[#allocation2 + $0x82]]
        %v224 = vld [vmem:[%s202] sm:$0x3]
        %v225 = vstv %s223
        %v226 = vmul.f32 %v225, %v224
        %v227 = vadd.f32 %v222, %v226
        %s228 = sld [smem:[#allocation2 + $0x83]]
        %v229 = vld [vmem:[%s208] sm:$0x3]
        %v230 = vstv %s228
        %v231 = vmul.f32 %v230, %v229
        %v232 = vadd.f32 %v227, %v231
        %s233 = scalar_lea.vmem %s190, 2 [#allocation7]
        %234 = vst [vmem:[%s233] sm:$0x3] %v232
        %s235 = sld [smem:[#allocation2 + $0x100]]
        %v236 = vld [vmem:[%s169] sm:$0x3]
        %v237 = vstv %s235
        %v238 = vmul.f32 %v237, %v236
        %s239 = sld [smem:[#allocation2 + $0x101]]
        %v240 = vld [vmem:[%s196] sm:$0x3]
        %v241 = vstv %s239
        %v242 = vmul.f32 %v241, %v240
        %v243 = vadd.f32 %v238, %v242
        %s244 = sld [smem:[#allocation2 + $0x102]]
        %v245 = vld [vmem:[%s202] sm:$0x3]
        %v246 = vstv %s244
        %v247 = vmul.f32 %v246, %v245
        %v248 = vadd.f32 %v243, %v247
        %s249 = sld [smem:[#allocation2 + $0x103]]
        %v250 = vld [vmem:[%s208] sm:$0x3]
        %v251 = vstv %s249
        %v252 = vmul.f32 %v251, %v250
        %v253 = vadd.f32 %v248, %v252
        %s254 = scalar_lea.vmem %s190, 4 [#allocation7]
        %255 = vst [vmem:[%s254] sm:$0x3] %v253
        %s256 = sld [smem:[#allocation2 + $0x180]]
        %v257 = vld [vmem:[%s169] sm:$0x3]
        %v258 = vstv %s256
        %v259 = vmul.f32 %v258, %v257
        %s260 = sld [smem:[#allocation2 + $0x181]]
        %v261 = vld [vmem:[%s196] sm:$0x3]
        %v262 = vstv %s260
        %v263 = vmul.f32 %v262, %v261
        %v264 = vadd.f32 %v259, %v263
        %s265 = sld [smem:[#allocation2 + $0x182]]
        %v266 = vld [vmem:[%s202] sm:$0x3]
        %v267 = vstv %s265
        %v268 = vmul.f32 %v267, %v266
        %v269 = vadd.f32 %v264, %v268
        %s270 = sld [smem:[#allocation2 + $0x183]]
        %v271 = vld [vmem:[%s208] sm:$0x3]
        %v272 = vstv %s270
        %v273 = vmul.f32 %v272, %v271
        %v274 = vadd.f32 %v269, %v273
        %s275 = scalar_lea.vmem %s190, 6 [#allocation7]
        %276 = vst [vmem:[%s275] sm:$0x3] %v274
        %s277 = sand.u32 %s91, 1
        %s278 = scalar_lea.sflag [#allocation4], %s277
        %s279 = sand.u32 %s91, 1
        %s280 = smul.addr %s279, 8
        %s281 = scalar_lea.vmem [#allocation7], %s280
        // Predicated region
        $region37: #{tpu_custom_call.1} parent=27 // pred_check
          %p282 = pneg %p101
        $region38: #{tpu_custom_call.1} parent=27 // pred_check_branch
          %284 = sbr.rel (%p282) target = $region40
        $region39: #{tpu_custom_call.1} parent=27 // pred_region
          %s286 = ssub.s32 128, 128
          %287 = vsyncadd %s278, %s286
          %s288 = smul.addr %s24, 4
          %s289 = sadd.s32 %s25, %s288
          %s290 = smul.addr %s289, 32
          %s291 = scalar_lea.hbm %s2, %s290
          %s292 = sshll.u32 %s281, 4
          %s293 = int_to_ptr.vmem [resolvable:$true] %s292
          %298 = dma.vmem_to_hbm [thread:$0]  %s293, 128, %s291, %s278, 32, 32, 2
        $region40: #{tpu_custom_call.1} parent=27 // pred_fallthru
          _
      $region28: #{tpu_custom_call.1} parent=5 // pred_fallthru
        _
      %p299 = scmp.le.s32.totalorder 2, %s15
      // Predicated region
      $region41: #{tpu_custom_call.1} parent=5 // pred_check
        %p300 = pneg %p299
      $region42: #{tpu_custom_call.1} parent=5 // pred_check_branch
        %302 = sbr.rel (%p300) target = $region44
      $region43: #{tpu_custom_call.1} parent=5 // pred_region
        %s303 = ssub.s32 %s15, 2
        // Predicated region
        $region45: #{tpu_custom_call.1} parent=43 // pred_check
          %p304 = pneg %p107
        $region46: #{tpu_custom_call.1} parent=43 // pred_check_branch
          %306 = sbr.rel (%p304) target = $region48
        $region47: #{tpu_custom_call.1} parent=43 // pred_region
          %s307 = sand.u32 %s92, 1
          %s308 = scalar_lea.sflag [#allocation4], %s307
          %s309 = sand.u32 %s92, 1
          %s310 = smul.addr %s309, 8
          %s311 = scalar_lea.vmem [#allocation7], %s310
          %312 = dma.done %s308, 128
        $region48: #{tpu_custom_call.1} parent=43 // pred_fallthru
          _
      $region44: #{tpu_custom_call.1} parent=5 // pred_fallthru
        _
    $region6: #{tpu_custom_call.1} parent=1 // loop_footer
      %s19 = sadd.s32 1, %s15
    $region7: #{tpu_custom_call.1} parent=1 // loop_footer_branch
      %14 = sbr.rel target = $region3
    $region8: #{tpu_custom_call.1} parent=1 // loop_exit
      _
    %313 = vsyncpa [#allocation3], 1
    %s314 = scalar_lea.sflag [#allocation3], 1
    %315 = vsyncpa %s314, 1
    %316 = vsyncpa [#allocation4], 1
    %s317 = scalar_lea.sflag [#allocation4], 1
    %318 = vsyncpa %s317, 1
    %319 = vsyncpa [#allocation5], 1
    %s320 = scalar_lea.sflag [#allocation5], 1
    %321 = vsyncpa %s320, 1

</llo_original>
